<compile_context>
chip_gen: v5e
topology: v5e:2x2
jax: 0.10.0
libtpu: 0.0.40
codegen_flags: <defaults>
</compile_context>

<pallas_src>
import functools

import jax
import jax.numpy as jnp
from jax.experimental import pallas as pl
from jax.experimental.pallas import tpu as pltpu

EPS = 1e-5


# ---------------------------------------------------------------------------
# Hardware-aware budgets
# ---------------------------------------------------------------------------
def _budgets():
    """VMEM limit / block-size budgets per TPU generation (conservative default)."""
    vmem_cap = None
    try:
        info = pltpu.get_tpu_info()
        vmem_cap = getattr(info, "vmem_capacity_bytes", None)
    except Exception:
        vmem_cap = None
    if vmem_cap is not None and vmem_cap >= 100 * (1 << 20):
        # v5e / v6e: 128 MiB physical VMEM -> large blocks, big scoped limit.
        return {"vmem_limit": 96 << 20, "block_budget": 6 << 20, "fused_slab": 12 << 20}
    # v7x (64 MiB physical / 32 MiB scoped) or unknown: stay conservative.
    return {"vmem_limit": 32 << 20, "block_budget": 4 << 20, "fused_slab": 4 << 20}


def _largest_divisor_multiple(dim, unit, cap):
    """Largest multiple of `unit` that divides `dim` and is <= cap (None if none)."""
    best = None
    t = unit
    cap = min(cap, dim)
    while t <= cap:
        if dim % t == 0:
            best = t
        t += unit
    return best


# ---------------------------------------------------------------------------
# Fused single-pass kernels (stats + normalize, x resident in VMEM)
# ---------------------------------------------------------------------------
def _bn_fused3d_kernel(x_ref, g_ref, b_ref, o_ref, *, eps):
    x = x_ref[...].astype(jnp.float32)                       # (N, bc, L)
    inv_m = 1.0 / (x.shape[0] * x.shape[2])
    mean = jnp.sum(x, axis=(0, 2), keepdims=True) * inv_m    # (1, bc, 1)
    xc = x - mean
    var = jnp.sum(xc * xc, axis=(0, 2), keepdims=True) * inv_m
    scale = g_ref[...][None, :, :] * jax.lax.rsqrt(var + eps)
    o_ref[...] = (xc * scale + b_ref[...][None, :, :]).astype(o_ref.dtype)


def _bn_fused2d_kernel(x_ref, g_ref, b_ref, o_ref, *, eps):
    x = x_ref[...].astype(jnp.float32)                       # (N, bc) -- C on lanes
    inv_m = 1.0 / x.shape[0]
    mean = jnp.sum(x, axis=0, keepdims=True) * inv_m         # (1, bc)
    xc = x - mean
    var = jnp.sum(xc * xc, axis=0, keepdims=True) * inv_m
    scale = g_ref[...] * jax.lax.rsqrt(var + eps)
    o_ref[...] = (xc * scale + b_ref[...]).astype(o_ref.dtype)


# ---------------------------------------------------------------------------
# Two-pass fallback kernels (x streamed twice)
# ---------------------------------------------------------------------------
def _bn_stats3d_kernel(x_ref, sum_ref, ssq_ref, s_acc, q_acc):
    ni = pl.program_id(1)
    li = pl.program_id(2)

    @pl.when((ni == 0) & (li == 0))
    def _():
        s_acc[...] = jnp.zeros_like(s_acc)
        q_acc[...] = jnp.zeros_like(q_acc)

    x = x_ref[...].astype(jnp.float32)            # (bn, bc, bl)
    # Pure-VPU accumulation into lane-wide (bc, bl) partials: no per-step XLU
    # cross-lane reduce, no per-step masked 1-lane stores.
    s_acc[...] += jnp.sum(x, axis=0)
    q_acc[...] += jnp.sum(x * x, axis=0)

    @pl.when((ni == pl.num_programs(1) - 1) & (li == pl.num_programs(2) - 1))
    def _():
        sum_ref[...] = jnp.sum(s_acc[...], axis=1, keepdims=True)   # (bc, 1)
        ssq_ref[...] = jnp.sum(q_acc[...], axis=1, keepdims=True)


def _bn_norm3d_kernel(x_ref, scale_ref, shift_ref, o_ref):
    x = x_ref[...].astype(jnp.float32)            # (bn, bc, bl)
    o_ref[...] = (x * scale_ref[...][None, :, :]
                  + shift_ref[...][None, :, :]).astype(o_ref.dtype)


def _bn_stats2d_kernel(x_ref, sum_ref, ssq_ref):
    ni = pl.program_id(1)

    @pl.when(ni == 0)
    def _():
        sum_ref[...] = jnp.zeros_like(sum_ref)
        ssq_ref[...] = jnp.zeros_like(ssq_ref)

    x = x_ref[...].astype(jnp.float32)            # (bn, bc) -- C on lanes
    sum_ref[...] += jnp.sum(x, axis=0, keepdims=True)
    ssq_ref[...] += jnp.sum(x * x, axis=0, keepdims=True)


def _bn_norm2d_kernel(x_ref, scale_ref, shift_ref, o_ref):
    x = x_ref[...].astype(jnp.float32)
    o_ref[...] = (x * scale_ref[...] + shift_ref[...]).astype(o_ref.dtype)


# ---------------------------------------------------------------------------
# Tiling helpers
# ---------------------------------------------------------------------------
def _choose_tiles_3d(n, c, l, block_budget):
    bl = _largest_divisor_multiple(l, 128, 4096) or l        # lane-dense L tile
    cap_c = max(8, block_budget // max(1, bl * 4))
    bc = _largest_divisor_multiple(c, 8, min(512, cap_c)) or c
    per_n = bc * bl * 4
    cap_n = max(1, block_budget // per_n)
    bn = 1
    for d in range(1, min(n, cap_n, 4096) + 1):
        if n % d == 0:
            bn = d
    return bn, bc, bl


# ---------------------------------------------------------------------------
# 3-D (N, C, L) path
# ---------------------------------------------------------------------------
def _batchnorm1d_3d(x, gamma, beta, eps, force_two_pass=False):
    n, c, l = x.shape
    b = _budgets()
    g2 = gamma.reshape(c, 1).astype(jnp.float32)
    b2 = beta.reshape(c, 1).astype(jnp.float32)

    # ---- fused single-pass fast path --------------------------------------
    if not force_two_pass:
        per_c_bytes = n * l * 4
        cap_c = b["fused_slab"] // per_c_bytes
        if cap_c >= c:
            bc_f = c
        else:
            bc_f = _largest_divisor_multiple(c, 8, cap_c)
        if bc_f is not None:
            # Prefer >=2 C tiles (megacore on v7x) when C allows it.
            if bc_f == c and c >= 16 and c % 8 == 0:
                half = _largest_divisor_multiple(c, 8, c // 2)
                if half:
                    bc_f = half
            grid = (c // bc_f,)
            return pl.pallas_call(
                functools.partial(_bn_fused3d_kernel, eps=eps),
                out_shape=jax.ShapeDtypeStruct((n, c, l), x.dtype),
                grid_spec=pltpu.PrefetchScalarGridSpec(
                    num_scalar_prefetch=0,
                    grid=grid,
                    in_specs=[
                        pl.BlockSpec((n, bc_f, l), lambda ci: (0, ci, 0)),
                        pl.BlockSpec((bc_f, 1), lambda ci: (ci, 0)),
                        pl.BlockSpec((bc_f, 1), lambda ci: (ci, 0)),
                    ],
                    out_specs=pl.BlockSpec((n, bc_f, l), lambda ci: (0, ci, 0)),
                ),
                compiler_params=pltpu.CompilerParams(
                    dimension_semantics=("parallel",),
                    vmem_limit_bytes=b["vmem_limit"],
                ),
            )(x, g2, b2)

    # ---- two-pass fallback: stats, O(C) glue, normalize --------------------
    bn_, bc, bl = _choose_tiles_3d(n, c, l, b["block_budget"])
    if c // bc == 1 and c >= 16 and c % 8 == 0:
        half = _largest_divisor_multiple(c, 8, c // 2)   # >=2 tiles on the parallel axis
        if half:
            bc = half
    grid = (c // bc, n // bn_, l // bl)

    sums, ssq = pl.pallas_call(
        _bn_stats3d_kernel,
        out_shape=(
            jax.ShapeDtypeStruct((c, 1), jnp.float32),
            jax.ShapeDtypeStruct((c, 1), jnp.float32),
        ),
        grid_spec=pltpu.PrefetchScalarGridSpec(
            num_scalar_prefetch=0,
            grid=grid,
            in_specs=[
                pl.BlockSpec((bn_, bc, bl), lambda ci, ni, li: (ni, ci, li)),
            ],
            out_specs=[
                pl.BlockSpec((bc, 1), lambda ci, ni, li: (ci, 0)),
                pl.BlockSpec((bc, 1), lambda ci, ni, li: (ci, 0)),
            ],
            scratch_shapes=[
                pltpu.VMEM((bc, bl), jnp.float32),
                pltpu.VMEM((bc, bl), jnp.float32),
            ],
        ),
        compiler_params=pltpu.CompilerParams(
            dimension_semantics=("parallel", "arbitrary", "arbitrary"),
            vmem_limit_bytes=b["vmem_limit"],
        ),
    )(x)

    m = float(n * l)
    mean = sums / m
    var = jnp.maximum(ssq / m - mean * mean, 0.0)   # biased variance
    scale = g2 * jax.lax.rsqrt(var + eps)
    shift = b2 - mean * scale

    return pl.pallas_call(
        _bn_norm3d_kernel,
        out_shape=jax.ShapeDtypeStruct((n, c, l), x.dtype),
        grid_spec=pltpu.PrefetchScalarGridSpec(
            num_scalar_prefetch=0,
            grid=grid,
            in_specs=[
                pl.BlockSpec((bn_, bc, bl), lambda ci, ni, li: (ni, ci, li)),
                pl.BlockSpec((bc, 1), lambda ci, ni, li: (ci, 0)),
                pl.BlockSpec((bc, 1), lambda ci, ni, li: (ci, 0)),
            ],
            out_specs=pl.BlockSpec((bn_, bc, bl), lambda ci, ni, li: (ni, ci, li)),
        ),
        compiler_params=pltpu.CompilerParams(
            dimension_semantics=("parallel", "parallel", "parallel"),
            vmem_limit_bytes=b["vmem_limit"],
        ),
    )(x, scale, shift)


# ---------------------------------------------------------------------------
# 2-D (N, C) path: C on the lane axis, reduce over N (sublane axis)
# ---------------------------------------------------------------------------
def _batchnorm1d_2d(x, gamma, beta, eps, force_two_pass=False):
    n, c = x.shape
    b = _budgets()
    g2 = gamma.reshape(1, c).astype(jnp.float32)
    b2 = beta.reshape(1, c).astype(jnp.float32)

    # ---- fused single-pass fast path --------------------------------------
    if not force_two_pass:
        per_c_bytes = n * 4
        cap_c = b["fused_slab"] // per_c_bytes
        if cap_c >= c:
            bc_f = c
        else:
            bc_f = _largest_divisor_multiple(c, 128, cap_c)
        if bc_f is not None:
            if bc_f == c and c >= 256 and c % 128 == 0:
                half = _largest_divisor_multiple(c, 128, c // 2)
                if half:
                    bc_f = half
            grid = (c // bc_f,)
            return pl.pallas_call(
                functools.partial(_bn_fused2d_kernel, eps=eps),
                out_shape=jax.ShapeDtypeStruct((n, c), x.dtype),
                grid_spec=pltpu.PrefetchScalarGridSpec(
                    num_scalar_prefetch=0,
                    grid=grid,
                    in_specs=[
                        pl.BlockSpec((n, bc_f), lambda ci: (0, ci)),
                        pl.BlockSpec((1, bc_f), lambda ci: (0, ci)),
                        pl.BlockSpec((1, bc_f), lambda ci: (0, ci)),
                    ],
                    out_specs=pl.BlockSpec((n, bc_f), lambda ci: (0, ci)),
                ),
                compiler_params=pltpu.CompilerParams(
                    dimension_semantics=("parallel",),
                    vmem_limit_bytes=b["vmem_limit"],
                ),
            )(x, g2, b2)

    # ---- two-pass fallback --------------------------------------------------
    bc = _largest_divisor_multiple(c, 128, 2048) or c
    cap_n = max(8, b["block_budget"] // max(1, bc * 4))
    bn_ = _largest_divisor_multiple(n, 8, cap_n) or n
    grid = (c // bc, n // bn_)

    sums, ssq = pl.pallas_call(
        _bn_stats2d_kernel,
        out_shape=(
            jax.ShapeDtypeStruct((1, c), jnp.float32),
            jax.ShapeDtypeStruct((1, c), jnp.float32),
        ),
        grid_spec=pltpu.PrefetchScalarGridSpec(
            num_scalar_prefetch=0,
            grid=grid,
            in_specs=[pl.BlockSpec((bn_, bc), lambda ci, ni: (ni, ci))],
            out_specs=[
                pl.BlockSpec((1, bc), lambda ci, ni: (0, ci)),
                pl.BlockSpec((1, bc), lambda ci, ni: (0, ci)),
            ],
        ),
        compiler_params=pltpu.CompilerParams(
            dimension_semantics=("parallel", "arbitrary"),
            vmem_limit_bytes=b["vmem_limit"],
        ),
    )(x)

    m = float(n)
    mean = sums / m
    var = jnp.maximum(ssq / m - mean * mean, 0.0)
    scale = g2 * jax.lax.rsqrt(var + eps)
    shift = b2 - mean * scale

    return pl.pallas_call(
        _bn_norm2d_kernel,
        out_shape=jax.ShapeDtypeStruct((n, c), x.dtype),
        grid_spec=pltpu.PrefetchScalarGridSpec(
            num_scalar_prefetch=0,
            grid=grid,
            in_specs=[
                pl.BlockSpec((bn_, bc), lambda ci, ni: (ni, ci)),
                pl.BlockSpec((1, bc), lambda ci, ni: (0, ci)),
                pl.BlockSpec((1, bc), lambda ci, ni: (0, ci)),
            ],
            out_specs=pl.BlockSpec((bn_, bc), lambda ci, ni: (ni, ci)),
        ),
        compiler_params=pltpu.CompilerParams(
            dimension_semantics=("parallel", "parallel"),
            vmem_limit_bytes=b["vmem_limit"],
        ),
    )(x, scale, shift)


# ---------------------------------------------------------------------------
# Public wrapper
# ---------------------------------------------------------------------------
def batchnorm1d(x, gamma, beta, eps=EPS, force_two_pass=False):
    """Training-mode BatchNorm1d forward. x: (N, C, L) or (N, C)."""
    if x.ndim == 2:
        return _batchnorm1d_2d(x, gamma, beta, eps, force_two_pass)
    assert x.ndim == 3, "BatchNorm1d expects (N, C) or (N, C, L) input"
    return _batchnorm1d_3d(x, gamma, beta, eps, force_two_pass)


# ---------------------------------------------------------------------------
# Reference + test
# ---------------------------------------------------------------------------
def _reference(x, gamma, beta, eps=EPS):
    axes = (0,) if x.ndim == 2 else (0, 2)
    mean = jnp.mean(x, axis=axes, keepdims=True)
    var = jnp.mean((x - mean) ** 2, axis=axes, keepdims=True)
    shp = (1, -1) + (1,) * (x.ndim - 2)
    return (x - mean) / jnp.sqrt(var + eps) * gamma.reshape(shp) + beta.reshape(shp)


if __name__ == "__main__":
    key = jax.random.PRNGKey(0)
    ok = True

    cases = [
        ((2, 8, 64), False),     # fused 3-D path
        ((4, 16, 256), False),   # fused 3-D path, 2 C tiles
        ((4, 16, 256), True),    # two-pass 3-D fallback
        ((32, 16), False),       # fused 2-D path (C on lanes)
        ((32, 16), True),        # two-pass 2-D fallback
    ]

    for shape, force_two_pass in cases:
        key, k1, k2, k3 = jax.random.split(key, 4)
        x = jax.random.normal(k1, shape, dtype=jnp.float32)
        cdim = shape[1]
        gamma = 1.0 + 0.1 * jax.random.normal(k2, (cdim,), dtype=jnp.float32)
        beta = 0.1 * jax.random.normal(k3, (cdim,), dtype=jnp.float32)

        out = batchnorm1d(x, gamma, beta, force_two_pass=force_two_pass)
        out = jax.block_until_ready(out)

        ref = _reference(x, gamma, beta)
        err = float(jnp.max(jnp.abs(out - ref)))
        if out.shape != x.shape or err > 3e-4:
            ok = False
            print(f"mismatch at {shape} (two_pass={force_two_pass}): max abs err = {err}")

    if ok:
        print("KERNEL_OK")
</pallas_src>

<mosaic_0001>
module attributes {stable_mosaic.version = 11 : i64} {
  func.func @_bn_fused3d_kernel(%arg0: i32, %arg1: memref<2x8x64xf32, #tpu.memory_space<vmem>>, %arg2: memref<8x1xf32, #tpu.memory_space<vmem>>, %arg3: memref<8x1xf32, #tpu.memory_space<vmem>>, %arg4: memref<2x8x64xf32, #tpu.memory_space<vmem>>) attributes {dimension_semantics = [#tpu.dimension_semantics<parallel>], iteration_bounds = array<i64: 1>, scalar_prefetch = 0 : i64, scratch_operands = 0 : i64, tpu.core_type = #tpu.core_type<tc>, window_params = [{transform_indices = @transform_0, window_bounds = array<i64: 2, 8, 64>}, {transform_indices = @transform_1, window_bounds = array<i64: 8, 1>}, {transform_indices = @transform_2, window_bounds = array<i64: 8, 1>}, {transform_indices = @transform_3, window_bounds = array<i64: 2, 8, 64>}]} {
    %c0 = arith.constant 0 : index
    %c0_0 = arith.constant 0 : index
    %c0_1 = arith.constant 0 : index
    %0 = vector.load %arg1[%c0, %c0_0, %c0_1] : memref<2x8x64xf32, #tpu.memory_space<vmem>>, vector<2x8x64xf32>
    %cst = arith.constant dense<0.000000e+00> : vector<8xf32>
    %1 = vector.multi_reduction <add>, %0, %cst [0, 2] : vector<2x8x64xf32> to vector<8xf32>
    %2 = vector.shape_cast %1 : vector<8xf32> to vector<1x8x1xf32>
    %cst_2 = arith.constant 7.812500e-03 : f32
    %3 = vector.broadcast %cst_2 : f32 to vector<1x8x1xf32>
    %4 = arith.mulf %2, %3 : vector<1x8x1xf32>
    %5 = vector.broadcast %4 : vector<1x8x1xf32> to vector<2x8x64xf32>
    %6 = arith.subf %0, %5 : vector<2x8x64xf32>
    %7 = arith.mulf %6, %6 : vector<2x8x64xf32>
    %cst_3 = arith.constant dense<0.000000e+00> : vector<8xf32>
    %8 = vector.multi_reduction <add>, %7, %cst_3 [0, 2] : vector<2x8x64xf32> to vector<8xf32>
    %9 = vector.shape_cast %8 : vector<8xf32> to vector<1x8x1xf32>
    %cst_4 = arith.constant 7.812500e-03 : f32
    %10 = vector.broadcast %cst_4 : f32 to vector<1x8x1xf32>
    %11 = arith.mulf %9, %10 : vector<1x8x1xf32>
    %c0_5 = arith.constant 0 : index
    %c0_6 = arith.constant 0 : index
    %12 = vector.load %arg2[%c0_5, %c0_6] : memref<8x1xf32, #tpu.memory_space<vmem>>, vector<8x1xf32>
    %13 = vector.shape_cast %12 : vector<8x1xf32> to vector<1x8x1xf32>
    %cst_7 = arith.constant 9.99999974E-6 : f32
    %14 = vector.broadcast %cst_7 : f32 to vector<1x8x1xf32>
    %15 = arith.addf %11, %14 : vector<1x8x1xf32>
    %16 = math.rsqrt %15 : vector<1x8x1xf32>
    %17 = arith.mulf %13, %16 : vector<1x8x1xf32>
    %18 = vector.broadcast %17 : vector<1x8x1xf32> to vector<2x8x64xf32>
    %19 = arith.mulf %6, %18 : vector<2x8x64xf32>
    %c0_8 = arith.constant 0 : index
    %c0_9 = arith.constant 0 : index
    %20 = vector.load %arg3[%c0_8, %c0_9] : memref<8x1xf32, #tpu.memory_space<vmem>>, vector<8x1xf32>
    %21 = vector.shape_cast %20 : vector<8x1xf32> to vector<1x8x1xf32>
    %22 = vector.broadcast %21 : vector<1x8x1xf32> to vector<2x8x64xf32>
    %23 = arith.addf %19, %22 : vector<2x8x64xf32>
    %c0_10 = arith.constant 0 : index
    %c0_11 = arith.constant 0 : index
    %c0_12 = arith.constant 0 : index
    %24 = vector.load %arg4[%c0_10, %c0_11, %c0_12] : memref<2x8x64xf32, #tpu.memory_space<vmem>>, vector<2x8x64xf32>
    tpu.vector_store %arg4[%c0_10, %c0_11, %c0_12], %23 {strides = array<i32>} : memref<2x8x64xf32, #tpu.memory_space<vmem>>, vector<2x8x64xf32>,
    return
  }
  func.func @transform_0(%arg0: i32) -> (i32, i32, i32) {
    %c0_i32 = arith.constant 0 : i32
    %c0_i32_0 = arith.constant 0 : i32
    %c0_i32_1 = arith.constant 0 : i32
    return %c0_i32, %arg0, %c0_i32_0 : i32, i32, i32
  }
  func.func @transform_1(%arg0: i32) -> (i32, i32) {
    %c0_i32 = arith.constant 0 : i32
    %c0_i32_0 = arith.constant 0 : i32
    return %arg0, %c0_i32 : i32, i32
  }
  func.func @transform_2(%arg0: i32) -> (i32, i32) {
    %c0_i32 = arith.constant 0 : i32
    %c0_i32_0 = arith.constant 0 : i32
    return %arg0, %c0_i32 : i32, i32
  }
  func.func @transform_3(%arg0: i32) -> (i32, i32, i32) {
    %c0_i32 = arith.constant 0 : i32
    %c0_i32_0 = arith.constant 0 : i32
    %c0_i32_1 = arith.constant 0 : i32
    return %c0_i32, %arg0, %c0_i32_0 : i32, i32, i32
  }
}

</mosaic_0001>

<llo_original>
// kernel: tpu_custom_call.1
$region0: #{tpu_custom_call.1}
  #allocation0 [shape = 'u32[]', space=smem, size = 0x4, offset = 0x4, fixed_abs, tag = 'smem constant byte address 0x4 - core index']
  #allocation1 [shape = 'u32[72,128]{1,0:T(1,128)}', space=vmem, size = 0x9000, scoped, tag = 'internal scratch']
  %s0 = inlined_call_operand.vmem [shape: f32[2,8,64], index: 0, kind: input, shape index: {}]
  %s1 = inlined_call_operand.vmem [shape: f32[8,1], index: 1, kind: input, shape index: {}]
  %s2 = inlined_call_operand.vmem [shape: f32[8,1], index: 2, kind: input, shape index: {}]
  %s3 = inlined_call_operand.hbm [shape: f32[2,8,64], index: 3, kind: output, shape index: {}]
  %s4 = sld [smem:[#allocation0]]
  $region22: #{tpu_custom_call.1} parent=0
    _
  %s6 = ssub.s32 1, %s4
  %s7 = scalar_select 0, %s6, %s4
  $region1: #{tpu_custom_call.1} parent=0
    #allocation2 [shape = 'u8[8192]{0}', space=vmem, size = 0x2000, scoped, tag = 'output window, operand 0, single buffered']
    #allocation3 [shape = 's32[1]{0}', space=sflag, size = 0x4, scoped, tag = 'scoped memory for tpu_custom_call.1']
    %8 = vsyncpa [#allocation3], 0
    // Predicated region
    $region2: #{tpu_custom_call.1} parent=1 // pred_check
      _
    $region3: #{tpu_custom_call.1} parent=1 // pred_check_branch
      %10 = sbr.rel (0) target = $region5
    $region4: #{tpu_custom_call.1} parent=1 // pred_region
      _
    $region5: #{tpu_custom_call.1} parent=1 // pred_fallthru
      _
    // Predicated region
    $region6: #{tpu_custom_call.1} parent=1 // pred_check
      _
    $region7: #{tpu_custom_call.1} parent=1 // pred_check_branch
      %12 = sbr.rel (0) target = $region9
    $region8: #{tpu_custom_call.1} parent=1 // pred_region
      _
    $region9: #{tpu_custom_call.1} parent=1 // pred_fallthru
      _
    // Predicated region
    $region10: #{tpu_custom_call.1} parent=1 // pred_check
      _
    $region11: #{tpu_custom_call.1} parent=1 // pred_check_branch
      %14 = sbr.rel (0) target = $region13
    $region12: #{tpu_custom_call.1} parent=1 // pred_region
      _
    $region13: #{tpu_custom_call.1} parent=1 // pred_fallthru
      _
    %v15 = vld [vmem:[%s0] sm:$0xff]
    %v16 = vld [vmem:[%s0 + $0x8] sm:$0xff]
    %vm17 = vcmask 523264
    %v18 = vsel %vm17, %v15, 0.0
    %v19 = vsel %vm17, %v16, 0.0
    %v20 = vadd.f32 %v18, %v19
    %21 = vadd.xlane.f32.xlu0 %v20
    %v22 = vpop.xlane.xlu0 %21
    %v23 = vmul.f32 %v22, 0.0078125
    %v24 = vsub.f32 %v15, %v23
    %v25 = vsub.f32 %v16, %v23
    %v26 = vmul.f32 %v24, %v24
    %v27 = vmul.f32 %v25, %v25
    %v28 = vsel %vm17, %v26, 0.0
    %v29 = vsel %vm17, %v27, 0.0
    %v30 = vadd.f32 %v28, %v29
    %31 = vadd.xlane.f32.xlu0 %v30
    %v32 = vpop.xlane.xlu0 %31
    %v33 = vmul.f32 %v32, 0.0078125
    %v34 = vld [vmem:[%s1] sm:$0xff]
    %v35 = vadd.f32 %v33, 1e-05
    %v36 = vrsqrt.pop %v35
    %v37 = vmul.f32 %v36, %v35
    %v38 = vmul.f32 %v37, %v36
    %v39 = vmul.f32 0.5, %v38
    %v40 = vsub.f32 1.5, %v39
    %v41 = vmul.f32 %v36, %v40
    %vm42 = vweird.f32 %v35
    %vm43 = vweird.f32 %v36
    %vm44 = vmor %vm42, %vm43
    %v45 = vsel %vm44, %v36, %v41
    %v46 = vmul.f32 %v34, %v45
    %48 = vset.pattern.permute.xlu0 0
    %49 = vperm.xlu0 %48, %v46
    %v50 = vpop.permute.xlu0 %49
    %v52 = vmul.f32 %v24, %v50
    %v53 = vmul.f32 %v25, %v50
    %v54 = vld [vmem:[%s2] sm:$0xff]
    %56 = vset.pattern.permute.xlu0 0
    %57 = vperm.xlu0 %56, %v54
    %v58 = vpop.permute.xlu0 %57
    %v60 = vadd.f32 %v52, %v58
    %v61 = vadd.f32 %v53, %v58
    %62 = vst.msk [vmem:[#allocation2] sm:$0xff] %vm17, %v60
    %63 = vst.msk [vmem:[#allocation2 + $0x8] sm:$0xff] %vm17, %v61
    // Predicated region
    $region14: #{tpu_custom_call.1} parent=1 // pred_check
      _
    $region15: #{tpu_custom_call.1} parent=1 // pred_check_branch
      %65 = sbr.rel (0) target = $region17
    $region16: #{tpu_custom_call.1} parent=1 // pred_region
      %67 = vsyncadd [#allocation3], 0
      %s68 = sshll.u32 [#allocation2], 4
      %s69 = int_to_ptr.vmem [resolvable:$true] %s68
      %s70 = sshll.u32 %s3, 4
      %s71 = int_to_ptr.hbm [resolvable:$true] %s70
      %76 = dma.vmem_to_hbm [thread:$0]  %s69, 256, %s71, [#allocation3], 128, 128, 8
    $region17: #{tpu_custom_call.1} parent=1 // pred_fallthru
      _
    // Predicated region
    $region18: #{tpu_custom_call.1} parent=1 // pred_check
      _
    $region19: #{tpu_custom_call.1} parent=1 // pred_check_branch
      %78 = sbr.rel (0) target = $region21
    $region20: #{tpu_custom_call.1} parent=1 // pred_region
      %80 = dma.done [#allocation3], 256
    $region21: #{tpu_custom_call.1} parent=1 // pred_fallthru
      _
    %81 = vsyncpa [#allocation3], 1

</llo_original>
